<compile_context>
chip_gen: v5e
topology: v5e:2x2
jax: 0.10.0
libtpu: 0.0.40
codegen_flags: <defaults>
</compile_context>

<pallas_src>
import jax
import jax.numpy as jnp
from jax.experimental import pallas as pl
from jax.experimental.pallas import tpu as pltpu


def _mlp_kernel(x_ref, w1_ref, b1_ref, w2_ref, b2_ref, w3_ref, b3_ref, o_ref):
    # x_ref: (_in, TILE_B) bf16, feature-major (batch on lanes).
    # w*: bf16 torch layout (out, in); b*: f32 column vectors (out, 1).
    x = x_ref[...]

    # Layer 1: h1 = relu(W1 @ x + b1)  -> (_params, TILE_B)
    h = jnp.dot(w1_ref[...], x, preferred_element_type=jnp.float32)
    h = jnp.maximum(h + b1_ref[...], 0.0).astype(jnp.bfloat16)

    # Layer 2 (hidden): h2 = relu(W2 @ h1 + b2)  -> (_params, TILE_B)
    h = jnp.dot(w2_ref[...], h, preferred_element_type=jnp.float32)
    h = jnp.maximum(h + b2_ref[...], 0.0).astype(jnp.bfloat16)

    # Output layer: o = W3 @ h2 + b3  -> (_out, TILE_B), lane-dense store.
    o = jnp.dot(w3_ref[...], h, preferred_element_type=jnp.float32) + b3_ref[...]
    o_ref[...] = o.astype(o_ref.dtype)


def _round_up(v, m):
    return ((v + m - 1) // m) * m


def _pick_batch_tile(B, tile_b):
    """Batch tile: multiple of 128 (lane-dense), >= 2 grid steps when B >= 256
    (so v7x can shard across its two TensorCores), capped at tile_b, and never
    larger than ~half the rounded batch (limits zero-padding waste)."""
    b128 = _round_up(B, 128)
    if b128 < 256:
        return b128
    return max(128, min(tile_b, _round_up((b128 + 1) // 2, 128)))


def ann_forward(x, w1, b1, w2, b2, w3, b3, *, tile_b=8192):
    """Forward pass.  x: (B, _in) f32; weights torch layout (out, in); biases (out, 1)."""
    B, _in = x.shape
    _params = w1.shape[0]
    _out = w3.shape[0]

    tb = _pick_batch_tile(B, tile_b)
    Bp = _round_up(B, tb)
    if Bp != B:
        x = jnp.pad(x, ((0, Bp - B), (0, 0)))

    # Layout + dtype plumbing done once in the wrapper (not per grid step):
    # feature-major bf16 activations, bf16 weights, f32 biases.
    xt = x.astype(jnp.bfloat16).T                      # (_in, Bp)
    w1b, w2b, w3b = (w.astype(jnp.bfloat16) for w in (w1, w2, w3))

    # Resident operands: constant index_map, single-buffered (never re-fetched).
    def resident(shape):
        return pl.BlockSpec(shape, lambda i: (0, 0), pipeline_mode=pl.Buffered(1))

    out_t = pl.pallas_call(
        _mlp_kernel,
        out_shape=jax.ShapeDtypeStruct((_out, Bp), jnp.float32),
        grid=(Bp // tb,),
        in_specs=[
            pl.BlockSpec((_in, tb), lambda i: (0, i)),         # batch-tiled bf16 x
            resident((_params, _in)), resident((_params, 1)),
            resident((_params, _params)), resident((_params, 1)),
            resident((_out, _params)), resident((_out, 1)),
        ],
        out_specs=pl.BlockSpec((_out, tb), lambda i: (0, i)),  # lane-dense output
        compiler_params=pltpu.CompilerParams(
            dimension_semantics=("parallel",)),                # megacore on v7x
    )(xt, w1b, b1, w2b, b2, w3b, b3)

    # Layout plumbing back to torch's (B, _out); drop batch padding.
    return out_t[:, :B].T


def _torch_linear_init(key, fan_in, fan_out, dtype=jnp.float32):
    """Deterministic init matching torch.nn.Linear default: U(-1/sqrt(in), 1/sqrt(in)).

    Weights stored in torch layout (out, in); biases as column vectors (out, 1).
    """
    kw, kb = jax.random.split(key)
    bound = 1.0 / jnp.sqrt(jnp.float32(fan_in))
    w = jax.random.uniform(kw, (fan_out, fan_in), dtype, -bound, bound)
    b = jax.random.uniform(kb, (fan_out, 1), dtype, -bound, bound)
    return w, b


if __name__ == "__main__":
    B, _in, _params, _out = 64, 16, 32, 4

    key = jax.random.PRNGKey(0)
    kx, k1, k2, k3 = jax.random.split(key, 4)

    x = jax.random.normal(kx, (B, _in), jnp.float32)
    w1, b1 = _torch_linear_init(k1, _in, _params)
    w2, b2 = _torch_linear_init(k2, _params, _params)
    w3, b3 = _torch_linear_init(k3, _params, _out)

    out = ann_forward(x, w1, b1, w2, b2, w3, b3)
    jax.block_until_ready(out)

    # Pure-JAX f32 reference of the same forward pass (torch semantics:
    # y = x @ W.T + b).  Kernel uses bf16 operands with f32 accumulation,
    # so tolerance is loosened accordingly.
    h = jnp.maximum(x @ w1.T + b1.T, 0.0)
    h = jnp.maximum(h @ w2.T + b2.T, 0.0)
    ref = h @ w3.T + b3.T

    assert out.shape == (B, _out)
    assert jnp.allclose(out, ref, atol=2e-2, rtol=2e-2), (
        float(jnp.max(jnp.abs(out - ref))))

    print("KERNEL_OK")
</pallas_src>

<mosaic_0001>
module attributes {stable_mosaic.version = 11 : i64} {
  func.func @_mlp_kernel(%arg0: i32, %arg1: memref<16x128xbf16, #tpu.memory_space<vmem>>, %arg2: memref<32x16xbf16, #tpu.memory_space<vmem>>, %arg3: memref<32x1xf32, #tpu.memory_space<vmem>>, %arg4: memref<32x32xbf16, #tpu.memory_space<vmem>>, %arg5: memref<32x1xf32, #tpu.memory_space<vmem>>, %arg6: memref<4x32xbf16, #tpu.memory_space<vmem>>, %arg7: memref<4x1xf32, #tpu.memory_space<vmem>>, %arg8: memref<4x128xf32, #tpu.memory_space<vmem>>) attributes {dimension_semantics = [#tpu.dimension_semantics<parallel>], iteration_bounds = array<i64: 1>, scalar_prefetch = 0 : i64, scratch_operands = 0 : i64, tpu.core_type = #tpu.core_type<tc>, window_params = [{transform_indices = @transform_0, window_bounds = array<i64: 16, 128>}, {pipeline_mode = #tpu.pipeline_mode<synchronous>, transform_indices = @transform_1, window_bounds = array<i64: 32, 16>}, {pipeline_mode = #tpu.pipeline_mode<synchronous>, transform_indices = @transform_2, window_bounds = array<i64: 32, 1>}, {pipeline_mode = #tpu.pipeline_mode<synchronous>, transform_indices = @transform_3, window_bounds = array<i64: 32, 32>}, {pipeline_mode = #tpu.pipeline_mode<synchronous>, transform_indices = @transform_4, window_bounds = array<i64: 32, 1>}, {pipeline_mode = #tpu.pipeline_mode<synchronous>, transform_indices = @transform_5, window_bounds = array<i64: 4, 32>}, {pipeline_mode = #tpu.pipeline_mode<synchronous>, transform_indices = @transform_6, window_bounds = array<i64: 4, 1>}, {transform_indices = @transform_7, window_bounds = array<i64: 4, 128>}]} {
    %c0 = arith.constant 0 : index
    %c0_0 = arith.constant 0 : index
    %0 = vector.load %arg1[%c0, %c0_0] : memref<16x128xbf16, #tpu.memory_space<vmem>>, vector<16x128xbf16>
    %c0_1 = arith.constant 0 : index
    %c0_2 = arith.constant 0 : index
    %1 = vector.load %arg2[%c0_1, %c0_2] : memref<32x16xbf16, #tpu.memory_space<vmem>>, vector<32x16xbf16>
    %cst = arith.constant dense<0.000000e+00> : vector<32x128xf32>
    %2 = tpu.matmul %1, %0, %cst {dimension_numbers = #tpu.dot_dimension_numbers<[1], [0], [0], [1], [0, 0, 1, 1], [], []>} : vector<32x16xbf16>, vector<16x128xbf16>, vector<32x128xf32> -> vector<32x128xf32>
    %c0_3 = arith.constant 0 : index
    %c0_4 = arith.constant 0 : index
    %3 = vector.load %arg3[%c0_3, %c0_4] : memref<32x1xf32, #tpu.memory_space<vmem>>, vector<32x1xf32>
    %4 = vector.broadcast %3 : vector<32x1xf32> to vector<32x128xf32>
    %5 = arith.addf %2, %4 : vector<32x128xf32>
    %cst_5 = arith.constant 0.000000e+00 : f32
    %6 = vector.broadcast %cst_5 : f32 to vector<32x128xf32>
    %7 = arith.maximumf %5, %6 : vector<32x128xf32>
    %8 = arith.truncf %7 : vector<32x128xf32> to vector<32x128xbf16>
    %c0_6 = arith.constant 0 : index
    %c0_7 = arith.constant 0 : index
    %9 = vector.load %arg4[%c0_6, %c0_7] : memref<32x32xbf16, #tpu.memory_space<vmem>>, vector<32x32xbf16>
    %cst_8 = arith.constant dense<0.000000e+00> : vector<32x128xf32>
    %10 = tpu.matmul %9, %8, %cst_8 {dimension_numbers = #tpu.dot_dimension_numbers<[1], [0], [0], [1], [0, 0, 1, 1], [], []>} : vector<32x32xbf16>, vector<32x128xbf16>, vector<32x128xf32> -> vector<32x128xf32>
    %c0_9 = arith.constant 0 : index
    %c0_10 = arith.constant 0 : index
    %11 = vector.load %arg5[%c0_9, %c0_10] : memref<32x1xf32, #tpu.memory_space<vmem>>, vector<32x1xf32>
    %12 = vector.broadcast %11 : vector<32x1xf32> to vector<32x128xf32>
    %13 = arith.addf %10, %12 : vector<32x128xf32>
    %cst_11 = arith.constant 0.000000e+00 : f32
    %14 = vector.broadcast %cst_11 : f32 to vector<32x128xf32>
    %15 = arith.maximumf %13, %14 : vector<32x128xf32>
    %16 = arith.truncf %15 : vector<32x128xf32> to vector<32x128xbf16>
    %c0_12 = arith.constant 0 : index
    %c0_13 = arith.constant 0 : index
    %17 = vector.load %arg6[%c0_12, %c0_13] : memref<4x32xbf16, #tpu.memory_space<vmem>>, vector<4x32xbf16>
    %cst_14 = arith.constant dense<0.000000e+00> : vector<4x128xf32>
    %18 = tpu.matmul %17, %16, %cst_14 {dimension_numbers = #tpu.dot_dimension_numbers<[1], [0], [0], [1], [0, 0, 1, 1], [], []>} : vector<4x32xbf16>, vector<32x128xbf16>, vector<4x128xf32> -> vector<4x128xf32>
    %c0_15 = arith.constant 0 : index
    %c0_16 = arith.constant 0 : index
    %19 = vector.load %arg7[%c0_15, %c0_16] : memref<4x1xf32, #tpu.memory_space<vmem>>, vector<4x1xf32>
    %20 = vector.broadcast %19 : vector<4x1xf32> to vector<4x128xf32>
    %21 = arith.addf %18, %20 : vector<4x128xf32>
    %c0_17 = arith.constant 0 : index
    %c0_18 = arith.constant 0 : index
    %22 = vector.load %arg8[%c0_17, %c0_18] : memref<4x128xf32, #tpu.memory_space<vmem>>, vector<4x128xf32>
    tpu.vector_store %arg8[%c0_17, %c0_18], %21 {strides = array<i32>} : memref<4x128xf32, #tpu.memory_space<vmem>>, vector<4x128xf32>,
    return
  }
  func.func @transform_0(%arg0: i32) -> (i32, i32) {
    %c0_i32 = arith.constant 0 : i32
    %c0_i32_0 = arith.constant 0 : i32
    return %c0_i32, %arg0 : i32, i32
  }
  func.func @transform_1(%arg0: i32) -> (i32, i32) {
    %c0_i32 = arith.constant 0 : i32
    %c0_i32_0 = arith.constant 0 : i32
    %c0_i32_1 = arith.constant 0 : i32
    return %c0_i32, %c0_i32_0 : i32, i32
  }
  func.func @transform_2(%arg0: i32) -> (i32, i32) {
    %c0_i32 = arith.constant 0 : i32
    %c0_i32_0 = arith.constant 0 : i32
    %c0_i32_1 = arith.constant 0 : i32
    return %c0_i32, %c0_i32_0 : i32, i32
  }
  func.func @transform_3(%arg0: i32) -> (i32, i32) {
    %c0_i32 = arith.constant 0 : i32
    %c0_i32_0 = arith.constant 0 : i32
    %c0_i32_1 = arith.constant 0 : i32
    return %c0_i32, %c0_i32_0 : i32, i32
  }
  func.func @transform_4(%arg0: i32) -> (i32, i32) {
    %c0_i32 = arith.constant 0 : i32
    %c0_i32_0 = arith.constant 0 : i32
    %c0_i32_1 = arith.constant 0 : i32
    return %c0_i32, %c0_i32_0 : i32, i32
  }
  func.func @transform_5(%arg0: i32) -> (i32, i32) {
    %c0_i32 = arith.constant 0 : i32
    %c0_i32_0 = arith.constant 0 : i32
    %c0_i32_1 = arith.constant 0 : i32
    return %c0_i32, %c0_i32_0 : i32, i32
  }
  func.func @transform_6(%arg0: i32) -> (i32, i32) {
    %c0_i32 = arith.constant 0 : i32
    %c0_i32_0 = arith.constant 0 : i32
    %c0_i32_1 = arith.constant 0 : i32
    return %c0_i32, %c0_i32_0 : i32, i32
  }
  func.func @transform_7(%arg0: i32) -> (i32, i32) {
    %c0_i32 = arith.constant 0 : i32
    %c0_i32_0 = arith.constant 0 : i32
    return %c0_i32, %arg0 : i32, i32
  }
}

</mosaic_0001>

<llo_original>
// kernel: tpu_custom_call.1
$region0: #{tpu_custom_call.1}
  #allocation0 [shape = 'u32[]', space=smem, size = 0x4, offset = 0x4, fixed_abs, tag = 'smem constant byte address 0x4 - core index']
  #allocation1 [shape = 'u32[72,128]{1,0:T(1,128)}', space=vmem, size = 0x9000, scoped, tag = 'internal scratch']
  %s0 = inlined_call_operand.vmem [shape: bf16[16,128], index: 0, kind: input, shape index: {}]
  %s1 = inlined_call_operand.vmem [shape: bf16[32,16], index: 1, kind: input, shape index: {}]
  %s2 = inlined_call_operand.vmem [shape: f32[32,1], index: 2, kind: input, shape index: {}]
  %s3 = inlined_call_operand.vmem [shape: bf16[32,32], index: 3, kind: input, shape index: {}]
  %s4 = inlined_call_operand.vmem [shape: f32[32,1], index: 4, kind: input, shape index: {}]
  %s5 = inlined_call_operand.vmem [shape: bf16[4,32], index: 5, kind: input, shape index: {}]
  %s6 = inlined_call_operand.vmem [shape: f32[4,1], index: 6, kind: input, shape index: {}]
  %s7 = inlined_call_operand.hbm [shape: f32[4,128], index: 7, kind: output, shape index: {}]
  %s8 = sld [smem:[#allocation0]]
  $region38: #{tpu_custom_call.1} parent=0
    _
  %s10 = ssub.s32 1, %s8
  %s11 = scalar_select 0, %s10, %s8
  $region1: #{tpu_custom_call.1} parent=0
    #allocation2 [shape = 'u8[2048]{0}', space=vmem, size = 0x800, scoped, tag = 'output window, operand 0, single buffered']
    #allocation3 [shape = 's32[1]{0}', space=sflag, size = 0x4, scoped, tag = 'scoped memory for tpu_custom_call.1']
    %12 = vsyncpa [#allocation3], 0
    // Predicated region
    $region2: #{tpu_custom_call.1} parent=1 // pred_check
      _
    $region3: #{tpu_custom_call.1} parent=1 // pred_check_branch
      %14 = sbr.rel (0) target = $region5
    $region4: #{tpu_custom_call.1} parent=1 // pred_region
      _
    $region5: #{tpu_custom_call.1} parent=1 // pred_fallthru
      _
    // Predicated region
    $region6: #{tpu_custom_call.1} parent=1 // pred_check
      _
    $region7: #{tpu_custom_call.1} parent=1 // pred_check_branch
      %16 = sbr.rel (0) target = $region9
    $region8: #{tpu_custom_call.1} parent=1 // pred_region
      _
    $region9: #{tpu_custom_call.1} parent=1 // pred_fallthru
      _
    // Predicated region
    $region10: #{tpu_custom_call.1} parent=1 // pred_check
      _
    $region11: #{tpu_custom_call.1} parent=1 // pred_check_branch
      %18 = sbr.rel (0) target = $region13
    $region12: #{tpu_custom_call.1} parent=1 // pred_region
      _
    $region13: #{tpu_custom_call.1} parent=1 // pred_fallthru
      _
    // Predicated region
    $region14: #{tpu_custom_call.1} parent=1 // pred_check
      _
    $region15: #{tpu_custom_call.1} parent=1 // pred_check_branch
      %20 = sbr.rel (0) target = $region17
    $region16: #{tpu_custom_call.1} parent=1 // pred_region
      _
    $region17: #{tpu_custom_call.1} parent=1 // pred_fallthru
      _
    // Predicated region
    $region18: #{tpu_custom_call.1} parent=1 // pred_check
      _
    $region19: #{tpu_custom_call.1} parent=1 // pred_check_branch
      %22 = sbr.rel (0) target = $region21
    $region20: #{tpu_custom_call.1} parent=1 // pred_region
      _
    $region21: #{tpu_custom_call.1} parent=1 // pred_fallthru
      _
    // Predicated region
    $region22: #{tpu_custom_call.1} parent=1 // pred_check
      _
    $region23: #{tpu_custom_call.1} parent=1 // pred_check_branch
      %24 = sbr.rel (0) target = $region25
    $region24: #{tpu_custom_call.1} parent=1 // pred_region
      _
    $region25: #{tpu_custom_call.1} parent=1 // pred_fallthru
      _
    // Predicated region
    $region26: #{tpu_custom_call.1} parent=1 // pred_check
      _
    $region27: #{tpu_custom_call.1} parent=1 // pred_check_branch
      %26 = sbr.rel (0) target = $region29
    $region28: #{tpu_custom_call.1} parent=1 // pred_region
      _
    $region29: #{tpu_custom_call.1} parent=1 // pred_fallthru
      _
    %v28 = vld [vmem:[%s0] sm:$0xf]
    %v29 = vld [vmem:[%s0 + $0x4] sm:$0xf]
    %v30 = vld [vmem:[%s1] sm:$0xf]
    %v31 = vld [vmem:[%s1 + $0x4] sm:$0xf]
    %v32 = vld [vmem:[%s1 + $0x8] sm:$0xf]
    %v33 = vld [vmem:[%s1 + $0xc] sm:$0xf]
    %v34 = vld [vmem:[%s2] sm:$0xff]
    %v35 = vld [vmem:[%s2 + $0x8] sm:$0xff]
    %v36 = vld [vmem:[%s2 + $0x10] sm:$0xff]
    %v37 = vld [vmem:[%s2 + $0x18] sm:$0xff]
    %39 = vset.pattern.permute.xlu0 0
    %40 = vperm.xlu0 %39, %v34
    %v41 = vpop.permute.xlu0 %40
    %44 = vset.pattern.permute.xlu0 0
    %45 = vperm.xlu0 %44, %v35
    %v46 = vpop.permute.xlu0 %45
    %49 = vset.pattern.permute.xlu0 0
    %50 = vperm.xlu0 %49, %v36
    %v51 = vpop.permute.xlu0 %50
    %54 = vset.pattern.permute.xlu0 0
    %55 = vperm.xlu0 %54, %v37
    %v56 = vpop.permute.xlu0 %55
    %v62 = vunpack.c.l.b16 %v30
    %v63 = vunpack.c.l.b16 %v31
    %v64 = vunpack.c.l.b16 %v32
    %v65 = vunpack.c.l.b16 %v33
    %v66 = vpack.c.b16 %v63, %v62
    %v67 = vpack.c.b16 %v65, %v64
    %v70 = vunpack.c.l.b16 %v28
    %v71 = vunpack.c.l.b16 %v29
    %v72 = vpack.c.b16 %v71, %v70
    %vm74 = vcmask 130048
    %v76 = vsel %vm74, %v66, 0
    %v79 = vsel %vm74, %v67, 0
    %81 = vmatpush.bf16.msra.mxu0 0
    %82 = vmatpush.bf16.msra.mxu0 0
    %83 = vmatpush.bf16.msra.mxu0 0
    %84 = vmatpush.bf16.msra.mxu0 0
    %85 = vmatpush.bf16.msra.mxu0 0
    %86 = vmatpush.bf16.msra.mxu0 0
    %87 = vmatpush.bf16.msra.mxu0 0
    %88 = vmatpush.bf16.msra.mxu0 %v72
    %89 = vmatmul.bf16.gmra.mxu0 %v76
    %v90 = vpop.f32.mrf.mxu0
    %v91 = vadd.f32 %v41, %v90
    %v92 = vpop.f32.mrf.mxu0
    %v93 = vadd.f32 %v46, %v92
    %94 = vmatmul.bf16.gmra.mxu0 %v79
    %v95 = vpop.f32.mrf.mxu0
    %v96 = vadd.f32 %v51, %v95
    %v97 = vpop.f32.mrf.mxu0
    %v98 = vadd.f32 %v56, %v97
    %99 = vdwg.mxu0
    %v100 = vmax.f32 %v91, 0.0
    %v101 = vmax.f32 %v93, 0.0
    %v102 = vmax.f32 %v96, 0.0
    %v103 = vmax.f32 %v98, 0.0
    %v104 = vpack.c.bf16 %v101, %v100
    %v105 = vpack.c.bf16 %v103, %v102
    %v106 = vld [vmem:[%s3] sm:$0xf]
    %v107 = vld [vmem:[%s3 + $0x4] sm:$0xf]
    %v108 = vld [vmem:[%s3 + $0x8] sm:$0xf]
    %v109 = vld [vmem:[%s3 + $0xc] sm:$0xf]
    %v110 = vld [vmem:[%s4] sm:$0xff]
    %v111 = vld [vmem:[%s4 + $0x8] sm:$0xff]
    %v112 = vld [vmem:[%s4 + $0x10] sm:$0xff]
    %v113 = vld [vmem:[%s4 + $0x18] sm:$0xff]
    %115 = vset.pattern.permute.xlu0 0
    %116 = vperm.xlu0 %115, %v110
    %v117 = vpop.permute.xlu0 %116
    %120 = vset.pattern.permute.xlu0 0
    %121 = vperm.xlu0 %120, %v111
    %v122 = vpop.permute.xlu0 %121
    %125 = vset.pattern.permute.xlu0 0
    %126 = vperm.xlu0 %125, %v112
    %v127 = vpop.permute.xlu0 %126
    %130 = vset.pattern.permute.xlu0 0
    %131 = vperm.xlu0 %130, %v113
    %v132 = vpop.permute.xlu0 %131
    %v138 = vunpack.c.l.b16 %v106
    %v139 = vunpack.c.l.b16 %v107
    %v140 = vunpack.c.l.b16 %v108
    %v141 = vunpack.c.l.b16 %v109
    %v142 = vpack.c.b16 %v139, %v138
    %v143 = vpack.c.b16 %v141, %v140
    %vm144 = vcmask 261120
    %v146 = vsel %vm144, %v142, 0
    %v149 = vsel %vm144, %v143, 0
    %151 = vmatpush.bf16.msra.mxu0 0
    %152 = vmatpush.bf16.msra.mxu0 0
    %153 = vmatpush.bf16.msra.mxu0 0
    %154 = vmatpush.bf16.msra.mxu0 0
    %155 = vmatpush.bf16.msra.mxu0 0
    %156 = vmatpush.bf16.msra.mxu0 0
    %157 = vmatpush.bf16.msra.mxu0 %v105
    %158 = vmatpush.bf16.msra.mxu0 %v104
    %159 = vmatmul.bf16.gmra.mxu0 %v146
    %v160 = vpop.f32.mrf.mxu0
    %v161 = vadd.f32 %v117, %v160
    %v162 = vpop.f32.mrf.mxu0
    %v163 = vadd.f32 %v122, %v162
    %164 = vmatmul.bf16.gmra.mxu0 %v149
    %v165 = vpop.f32.mrf.mxu0
    %v166 = vadd.f32 %v127, %v165
    %v167 = vpop.f32.mrf.mxu0
    %v168 = vadd.f32 %v132, %v167
    %169 = vdwg.mxu0
    %v170 = vmax.f32 %v161, 0.0
    %v171 = vmax.f32 %v163, 0.0
    %v172 = vmax.f32 %v166, 0.0
    %v173 = vmax.f32 %v168, 0.0
    %v174 = vpack.c.bf16 %v171, %v170
    %v175 = vpack.c.bf16 %v173, %v172
    %v176 = vld [vmem:[%s5] sm:$0x3]
    %v177 = vld [vmem:[%s6] sm:$0xf]
    %179 = vset.pattern.permute.xlu0 0
    %180 = vperm.xlu0 %179, %v177
    %v181 = vpop.permute.xlu0 %180
    %v184 = vsel %vm144, %v176, 0
    %186 = vmatpush.bf16.msra.mxu0 0
    %187 = vmatpush.bf16.msra.mxu0 0
    %188 = vmatpush.bf16.msra.mxu0 0
    %189 = vmatpush.bf16.msra.mxu0 0
    %190 = vmatpush.bf16.msra.mxu0 0
    %191 = vmatpush.bf16.msra.mxu0 0
    %192 = vmatpush.bf16.msra.mxu0 %v175
    %193 = vmatpush.bf16.msra.mxu0 %v174
    %194 = vmatmul.bf16.gmra.mxu0 %v184
    %v195 = vpop.f32.mrf.mxu0
    %v196 = vadd.f32 %v181, %v195
    %v197 = vpop.f32.mrf.mxu0
    %198 = vdwg.mxu0
    %199 = vst [vmem:[#allocation2] sm:$0xf] %v196
    // Predicated region
    $region30: #{tpu_custom_call.1} parent=1 // pred_check
      _
    $region31: #{tpu_custom_call.1} parent=1 // pred_check_branch
      %201 = sbr.rel (0) target = $region33
    $region32: #{tpu_custom_call.1} parent=1 // pred_region
      %203 = vsyncadd [#allocation3], 0
      %s205 = sshll.u32 [#allocation2], 4
      %s206 = int_to_ptr.vmem [resolvable:$true] %s205
      %s207 = sshll.u32 %s7, 4
      %s208 = int_to_ptr.hbm [resolvable:$true] %s207
      %210 = dma.vmem_to_hbm [thread:$0]  %s206, 64, %s208, [#allocation3]
    $region33: #{tpu_custom_call.1} parent=1 // pred_fallthru
      _
    // Predicated region
    $region34: #{tpu_custom_call.1} parent=1 // pred_check
      _
    $region35: #{tpu_custom_call.1} parent=1 // pred_check_branch
      %212 = sbr.rel (0) target = $region37
    $region36: #{tpu_custom_call.1} parent=1 // pred_region
      %214 = dma.done [#allocation3], 64
    $region37: #{tpu_custom_call.1} parent=1 // pred_fallthru
      _
    %215 = vsyncpa [#allocation3], 1

</llo_original>
